<compile_context>
chip_gen: v7x
topology: tpu7x:2x2x1
jax: 0.10.0
libtpu: 0.0.40
codegen_flags: <defaults>
</compile_context>

<pallas_src>
import jax
import jax.numpy as jnp
from jax.experimental import pallas as pl
from jax.experimental.pallas import tpu as pltpu


def _vmem_capacity_bytes() -> int:
    """Physical VMEM per core; conservative fallback = v7x per-TC (64 MiB)."""
    try:
        info = pltpu.get_tpu_info()
        cap = int(getattr(info, "vmem_capacity_bytes", 0) or 0)
        if cap > 0:
            return cap
    except Exception:
        pass
    return 64 * 1024 * 1024


def _make_ncf_kernel(num_layers: int):
    """Build a kernel for a fixed (static) number of MLP layers."""

    def kernel(*refs):
        (mlp_u_ref, mlp_i_ref, gmf_u_ref, gmf_i_ref,
         w0u_ref, w0i_ref, b0_ref) = refs[:7]
        hidden = refs[7:7 + 2 * (num_layers - 1)]
        wp_g_ref, wp_m_ref, bp_ref = refs[7 + 2 * (num_layers - 1):
                                          10 + 2 * (num_layers - 1)]
        out_ref = refs[-1]

        # ---- MLP branch --------------------------------------------------
        # First layer in split-weight form: cat((u, i)) @ W0 == u@W0u + i@W0i.
        # No lane-axis concat, no misaligned slices.  Dropout == identity.
        w0u = w0u_ref[...]
        w0i = w0i_ref[...]
        x = (jnp.dot(mlp_u_ref[...].astype(w0u.dtype), w0u,
                     preferred_element_type=jnp.float32)
             + jnp.dot(mlp_i_ref[...].astype(w0i.dtype), w0i,
                       preferred_element_type=jnp.float32)
             + b0_ref[...].astype(jnp.float32))
        x = jnp.maximum(x, 0.0)                       # ReLU (f32; safe on v5e VPU)

        for l in range(num_layers - 1):
            w = hidden[2 * l][...]
            b = hidden[2 * l + 1][...].astype(jnp.float32)
            x = jnp.dot(x.astype(w.dtype), w,
                        preferred_element_type=jnp.float32) + b
            x = jnp.maximum(x, 0.0)

        # ---- GMF branch (elementwise, f32) --------------------------------
        gmf = (gmf_u_ref[...].astype(jnp.float32)
               * gmf_i_ref[...].astype(jnp.float32))

        # ---- Predict layer: split w_pred, "NT" contraction -> lane-dense
        # (1, TILE_B) output row (no concat, no masked (B, 1) stores).
        pred = jnp.einsum('of,bf->ob', wp_g_ref[...].astype(jnp.float32), gmf,
                          preferred_element_type=jnp.float32)
        pred = pred + jnp.einsum('of,bf->ob',
                                 wp_m_ref[...].astype(jnp.float32), x,
                                 preferred_element_type=jnp.float32)
        out_ref[...] = (pred + bp_ref[0, 0]).astype(out_ref.dtype)

    return kernel


def ncf_forward_pallas(gmf_u, gmf_i, mlp_u, mlp_i, mlp_weights, mlp_biases,
                       w_pred, b_pred, *, tile_b: int = 4096):
    """Run the NCF (NeuMF) hot path in a batch-tiled Pallas kernel.

    gmf_u, gmf_i : (B, F) gathered GMF embeddings
    mlp_u, mlp_i : (B, M) gathered MLP embeddings
    mlp_weights  : list of (in, out) matrices (already transposed vs. PyTorch)
    mlp_biases   : list of (1, out) bias rows
    w_pred       : (F + mlp_out, 1) predict weight (transposed)
    b_pred       : (1, 1) predict bias
    returns      : (B,) predictions (float32)   == prediction.view(-1)
    """
    num_layers = len(mlp_weights)
    assert num_layers >= 1
    B, F = gmf_u.shape
    M = mlp_u.shape[1]
    h0 = mlp_weights[0].shape[1]
    mlp_out = mlp_weights[-1].shape[1]
    assert w_pred.shape[0] == F + mlp_out

    act_bytes = jnp.dtype(mlp_u.dtype).itemsize
    d_total = 2 * M + 2 * F

    # Resident (fetched-once) parameter bytes.
    resident = int(w_pred.size) * jnp.dtype(w_pred.dtype).itemsize
    for w, b in zip(mlp_weights, mlp_biases):
        resident += int(w.size) * jnp.dtype(w.dtype).itemsize
        resident += int(b.size) * jnp.dtype(b.dtype).itemsize

    # ---- Tile size & VMEM limit derived from hardware + shapes -------------
    # v7x has 64 MiB physical VMEM per TC; v5e/v6e have 128 MiB.
    cap = _vmem_capacity_bytes()
    budget = min(int(cap * 0.75), 96 * 1024 * 1024)
    # per-row bytes: double-buffered activation inputs + f32 intermediates
    # (x and its casts) + double-buffered f32 output lane.
    per_row = 2 * d_total * act_bytes + 8 * d_total + 8
    avail = max(budget - resident - (4 << 20), 128 * per_row)
    max_tile = max(128, (avail // per_row) // 128 * 128)
    tile_b = min(int(tile_b), int(max_tile))
    if B <= tile_b:
        tile_b = B                                     # single block, full batch
    else:
        tile_b = max(128, (tile_b // 128) * 128)       # lane-dense output rows
    n_tiles = pl.cdiv(B, tile_b)                       # ragged last block, no pad

    vmem_need = resident + tile_b * per_row + (4 << 20)
    vmem_limit = int(min(max(vmem_need, 32 << 20), int(cap * 0.85)))

    # ---- Parameter re-packing (tiny, weight-sized, one-time) ---------------
    w0u = mlp_weights[0][:M, :]                        # (M, h0)
    w0i = mlp_weights[0][M:, :]                        # (M, h0)
    wp_gmf = w_pred[:F, :].reshape(1, F)
    wp_mlp = w_pred[F:, :].reshape(1, mlp_out)
    b_pred_s = jnp.asarray(b_pred, jnp.float32).reshape(1, 1)

    inputs = [mlp_u, mlp_i, gmf_u, gmf_i, w0u, w0i, mlp_biases[0]]
    in_specs = [
        pl.BlockSpec((tile_b, M), lambda i: (i, 0)),   # batch-tiled slabs
        pl.BlockSpec((tile_b, M), lambda i: (i, 0)),
        pl.BlockSpec((tile_b, F), lambda i: (i, 0)),
        pl.BlockSpec((tile_b, F), lambda i: (i, 0)),
        pl.BlockSpec((M, h0), lambda i: (0, 0)),       # resident params
        pl.BlockSpec((M, h0), lambda i: (0, 0)),
        pl.BlockSpec((1, h0), lambda i: (0, 0)),
    ]
    for w, b in zip(mlp_weights[1:], mlp_biases[1:]):
        inputs.extend([w, b])
        in_specs.append(pl.BlockSpec(w.shape, lambda i: (0, 0)))
        in_specs.append(pl.BlockSpec(b.shape, lambda i: (0, 0)))
    inputs.extend([wp_gmf, wp_mlp, b_pred_s])
    in_specs.append(pl.BlockSpec((1, F), lambda i: (0, 0)))
    in_specs.append(pl.BlockSpec((1, mlp_out), lambda i: (0, 0)))
    in_specs.append(pl.BlockSpec(memory_space=pltpu.MemorySpace.SMEM))

    out_spec = pl.BlockSpec((1, tile_b), lambda i: (0, i))   # lane-dense output

    out = pl.pallas_call(
        _make_ncf_kernel(num_layers),
        out_shape=jax.ShapeDtypeStruct((1, B), jnp.float32),
        grid_spec=pltpu.PrefetchScalarGridSpec(
            num_scalar_prefetch=0,
            grid=(n_tiles,),
            in_specs=in_specs,
            out_specs=out_spec,
        ),
        compiler_params=pltpu.CompilerParams(
            dimension_semantics=("parallel",),         # megacore-shardable batch
            vmem_limit_bytes=vmem_limit,
        ),
    )(*inputs)
    return out.reshape(-1)                             # prediction.view(-1)


def ncf_reference(gmf_u, gmf_i, mlp_u, mlp_i, mlp_weights, mlp_biases,
                  w_pred, b_pred):
    """Pure-JAX reference for correctness checking."""
    gmf = gmf_u * gmf_i
    x = jnp.concatenate([mlp_u, mlp_i], axis=-1)
    for w, b in zip(mlp_weights, mlp_biases):
        x = jnp.maximum(x @ w + b, 0.0)
    concat = jnp.concatenate([gmf, x], axis=-1)
    return (concat @ w_pred + b_pred).reshape(-1)


if __name__ == "__main__":
    # ---- Model hyperparameters (small, consistent with NCF __init__) ----
    num_users = 32
    num_items = 48
    num_factors = 8
    num_layers = 3
    batch = 8

    mlp_embedding_dim = num_factors * 2 ** (num_layers - 1)      # 32
    predictive_factors = num_factors * 2                          # NeuMF: 16

    key = jax.random.PRNGKey(0)
    ks = list(jax.random.split(key, 20))

    # ---- Deterministic parameter init (synthetic, matching shapes) ----
    gmf_user_emb = 0.01 * jax.random.normal(ks[0], (num_users, num_factors), jnp.float32)
    gmf_item_emb = 0.01 * jax.random.normal(ks[1], (num_items, num_factors), jnp.float32)
    mlp_user_emb = 0.01 * jax.random.normal(ks[2], (num_users, mlp_embedding_dim), jnp.float32)
    mlp_item_emb = 0.01 * jax.random.normal(ks[3], (num_items, mlp_embedding_dim), jnp.float32)

    mlp_weights, mlp_biases = [], []
    in_size = mlp_embedding_dim * 2
    for l in range(num_layers):
        out_size = in_size // 2
        limit = (6.0 / (in_size + out_size)) ** 0.5
        w = jax.random.uniform(ks[4 + l], (in_size, out_size), jnp.float32,
                               minval=-limit, maxval=limit)
        mlp_weights.append(w)
        mlp_biases.append(jnp.zeros((1, out_size), jnp.float32))
        in_size = out_size

    limit_p = (3.0 / predictive_factors) ** 0.5
    w_pred = jax.random.uniform(ks[10], (predictive_factors, 1), jnp.float32,
                                minval=-limit_p, maxval=limit_p)
    b_pred = jnp.zeros((1, 1), jnp.float32)

    def gather(user, item):
        # Embedding gather (glue, pure indexing done by XLA).
        return (gmf_user_emb[user], gmf_item_emb[item],
                mlp_user_emb[user], mlp_item_emb[item])

    fwd = jax.jit(ncf_forward_pallas, static_argnames=("tile_b",))

    # ---- small batch, f32: tight tolerance against the pure-JAX reference ----
    user = jax.random.randint(ks[11], (batch,), 0, num_users)
    item = jax.random.randint(ks[12], (batch,), 0, num_items)
    gmf_u, gmf_i, mlp_u, mlp_i = gather(user, item)

    out_f32 = jax.block_until_ready(
        fwd(gmf_u, gmf_i, mlp_u, mlp_i, mlp_weights, mlp_biases, w_pred, b_pred))
    ref = ncf_reference(gmf_u, gmf_i, mlp_u, mlp_i, mlp_weights, mlp_biases,
                        w_pred, b_pred)
    assert out_f32.shape == (batch,)
    assert jnp.allclose(out_f32, ref, atol=1e-5, rtol=1e-5), (out_f32, ref)

    # ---- bf16 embeddings/weights (bandwidth win on all generations, incl.
    # v5e), with f32 accumulation inside the kernel ----
    bf = jnp.bfloat16
    out_bf16 = jax.block_until_ready(
        fwd(gmf_u.astype(bf), gmf_i.astype(bf), mlp_u.astype(bf), mlp_i.astype(bf),
            [w.astype(bf) for w in mlp_weights],
            [b.astype(bf) for b in mlp_biases],
            w_pred.astype(bf), b_pred))
    assert out_bf16.shape == (batch,)
    assert jnp.allclose(out_bf16, ref, atol=5e-3), (out_bf16, ref)

    # ---- multi-tile path (resident weights across steps) and ragged last
    # block (no wrapper-side pad copy) ----
    for big_b in (384, 300):     # 384: exact tiles; 300: ragged last tile
        ub = jax.random.randint(ks[13], (big_b,), 0, num_users)
        ib = jax.random.randint(ks[14], (big_b,), 0, num_items)
        g_u, g_i, m_u, m_i = gather(ub, ib)
        out_big = jax.block_until_ready(
            fwd(g_u, g_i, m_u, m_i, mlp_weights, mlp_biases, w_pred, b_pred,
                tile_b=128))
        ref_big = ncf_reference(g_u, g_i, m_u, m_i, mlp_weights, mlp_biases,
                                w_pred, b_pred)
        assert out_big.shape == (big_b,)
        assert jnp.allclose(out_big, ref_big, atol=1e-5, rtol=1e-5)

    print("KERNEL_OK")
</pallas_src>

<mosaic_0001>
module attributes {stable_mosaic.version = 11 : i64} {
  func.func @kernel(%arg0: i32, %arg1: memref<8x32xf32, #tpu.memory_space<vmem>>, %arg2: memref<8x32xf32, #tpu.memory_space<vmem>>, %arg3: memref<8x8xf32, #tpu.memory_space<vmem>>, %arg4: memref<8x8xf32, #tpu.memory_space<vmem>>, %arg5: memref<32x32xf32, #tpu.memory_space<vmem>>, %arg6: memref<32x32xf32, #tpu.memory_space<vmem>>, %arg7: memref<1x32xf32, #tpu.memory_space<vmem>>, %arg8: memref<32x16xf32, #tpu.memory_space<vmem>>, %arg9: memref<1x16xf32, #tpu.memory_space<vmem>>, %arg10: memref<16x8xf32, #tpu.memory_space<vmem>>, %arg11: memref<1x8xf32, #tpu.memory_space<vmem>>, %arg12: memref<1x8xf32, #tpu.memory_space<vmem>>, %arg13: memref<1x8xf32, #tpu.memory_space<vmem>>, %arg14: memref<1x1xf32, #tpu.memory_space<smem>>, %arg15: memref<1x8xf32, #tpu.memory_space<vmem>>) attributes {dimension_semantics = [#tpu.dimension_semantics<parallel>], iteration_bounds = array<i64: 1>, scalar_prefetch = 0 : i64, scratch_operands = 0 : i64, tpu.core_type = #tpu.core_type<tc>, window_params = [{transform_indices = @transform_0, window_bounds = array<i64: 8, 32>}, {transform_indices = @transform_1, window_bounds = array<i64: 8, 32>}, {transform_indices = @transform_2, window_bounds = array<i64: 8, 8>}, {transform_indices = @transform_3, window_bounds = array<i64: 8, 8>}, {pipeline_mode = #tpu.pipeline_mode<synchronous>, transform_indices = @transform_4, window_bounds = array<i64: 32, 32>}, {pipeline_mode = #tpu.pipeline_mode<synchronous>, transform_indices = @transform_5, window_bounds = array<i64: 32, 32>}, {pipeline_mode = #tpu.pipeline_mode<synchronous>, transform_indices = @transform_6, window_bounds = array<i64: 1, 32>}, {pipeline_mode = #tpu.pipeline_mode<synchronous>, transform_indices = @transform_7, window_bounds = array<i64: 32, 16>}, {pipeline_mode = #tpu.pipeline_mode<synchronous>, transform_indices = @transform_8, window_bounds = array<i64: 1, 16>}, {pipeline_mode = #tpu.pipeline_mode<synchronous>, transform_indices = @transform_9, window_bounds = array<i64: 16, 8>}, {pipeline_mode = #tpu.pipeline_mode<synchronous>, transform_indices = @transform_10, window_bounds = array<i64: 1, 8>}, {pipeline_mode = #tpu.pipeline_mode<synchronous>, transform_indices = @transform_11, window_bounds = array<i64: 1, 8>}, {pipeline_mode = #tpu.pipeline_mode<synchronous>, transform_indices = @transform_12, window_bounds = array<i64: 1, 8>}, {transform_indices = @transform_13, window_bounds = array<i64: 1, 1>}, {transform_indices = @transform_14, window_bounds = array<i64: 1, 8>}]} {
    %c0 = arith.constant 0 : index
    %c0_0 = arith.constant 0 : index
    %0 = vector.load %arg5[%c0, %c0_0] : memref<32x32xf32, #tpu.memory_space<vmem>>, vector<32x32xf32>
    %c0_1 = arith.constant 0 : index
    %c0_2 = arith.constant 0 : index
    %1 = vector.load %arg6[%c0_1, %c0_2] : memref<32x32xf32, #tpu.memory_space<vmem>>, vector<32x32xf32>
    %c0_3 = arith.constant 0 : index
    %c0_4 = arith.constant 0 : index
    %2 = vector.load %arg1[%c0_3, %c0_4] : memref<8x32xf32, #tpu.memory_space<vmem>>, vector<8x32xf32>
    %cst = arith.constant dense<0.000000e+00> : vector<8x32xf32>
    %3 = tpu.matmul %2, %0, %cst {dimension_numbers = #tpu.dot_dimension_numbers<[1], [0], [0], [1], [0, 0, 1, 1], [], []>} : vector<8x32xf32>, vector<32x32xf32>, vector<8x32xf32> -> vector<8x32xf32>
    %c0_5 = arith.constant 0 : index
    %c0_6 = arith.constant 0 : index
    %4 = vector.load %arg2[%c0_5, %c0_6] : memref<8x32xf32, #tpu.memory_space<vmem>>, vector<8x32xf32>
    %cst_7 = arith.constant dense<0.000000e+00> : vector<8x32xf32>
    %5 = tpu.matmul %4, %1, %cst_7 {dimension_numbers = #tpu.dot_dimension_numbers<[1], [0], [0], [1], [0, 0, 1, 1], [], []>} : vector<8x32xf32>, vector<32x32xf32>, vector<8x32xf32> -> vector<8x32xf32>
    %6 = arith.addf %3, %5 : vector<8x32xf32>
    %c0_8 = arith.constant 0 : index
    %c0_9 = arith.constant 0 : index
    %7 = vector.load %arg7[%c0_8, %c0_9] : memref<1x32xf32, #tpu.memory_space<vmem>>, vector<1x32xf32>
    %8 = vector.broadcast %7 : vector<1x32xf32> to vector<8x32xf32>
    %9 = arith.addf %6, %8 : vector<8x32xf32>
    %cst_10 = arith.constant 0.000000e+00 : f32
    %10 = vector.broadcast %cst_10 : f32 to vector<8x32xf32>
    %11 = arith.maximumf %9, %10 : vector<8x32xf32>
    %c0_11 = arith.constant 0 : index
    %c0_12 = arith.constant 0 : index
    %12 = vector.load %arg8[%c0_11, %c0_12] : memref<32x16xf32, #tpu.memory_space<vmem>>, vector<32x16xf32>
    %c0_13 = arith.constant 0 : index
    %c0_14 = arith.constant 0 : index
    %13 = vector.load %arg9[%c0_13, %c0_14] : memref<1x16xf32, #tpu.memory_space<vmem>>, vector<1x16xf32>
    %cst_15 = arith.constant dense<0.000000e+00> : vector<8x16xf32>
    %14 = tpu.matmul %11, %12, %cst_15 {dimension_numbers = #tpu.dot_dimension_numbers<[1], [0], [0], [1], [0, 0, 1, 1], [], []>} : vector<8x32xf32>, vector<32x16xf32>, vector<8x16xf32> -> vector<8x16xf32>
    %15 = vector.broadcast %13 : vector<1x16xf32> to vector<8x16xf32>
    %16 = arith.addf %14, %15 : vector<8x16xf32>
    %cst_16 = arith.constant 0.000000e+00 : f32
    %17 = vector.broadcast %cst_16 : f32 to vector<8x16xf32>
    %18 = arith.maximumf %16, %17 : vector<8x16xf32>
    %c0_17 = arith.constant 0 : index
    %c0_18 = arith.constant 0 : index
    %19 = vector.load %arg10[%c0_17, %c0_18] : memref<16x8xf32, #tpu.memory_space<vmem>>, vector<16x8xf32>
    %c0_19 = arith.constant 0 : index
    %c0_20 = arith.constant 0 : index
    %20 = vector.load %arg11[%c0_19, %c0_20] : memref<1x8xf32, #tpu.memory_space<vmem>>, vector<1x8xf32>
    %cst_21 = arith.constant dense<0.000000e+00> : vector<8x8xf32>
    %21 = tpu.matmul %18, %19, %cst_21 {dimension_numbers = #tpu.dot_dimension_numbers<[1], [0], [0], [1], [0, 0, 1, 1], [], []>} : vector<8x16xf32>, vector<16x8xf32>, vector<8x8xf32> -> vector<8x8xf32>
    %22 = vector.broadcast %20 : vector<1x8xf32> to vector<8x8xf32>
    %23 = arith.addf %21, %22 : vector<8x8xf32>
    %cst_22 = arith.constant 0.000000e+00 : f32
    %24 = vector.broadcast %cst_22 : f32 to vector<8x8xf32>
    %25 = arith.maximumf %23, %24 : vector<8x8xf32>
    %c0_23 = arith.constant 0 : index
    %c0_24 = arith.constant 0 : index
    %26 = vector.load %arg3[%c0_23, %c0_24] : memref<8x8xf32, #tpu.memory_space<vmem>>, vector<8x8xf32>
    %c0_25 = arith.constant 0 : index
    %c0_26 = arith.constant 0 : index
    %27 = vector.load %arg4[%c0_25, %c0_26] : memref<8x8xf32, #tpu.memory_space<vmem>>, vector<8x8xf32>
    %28 = arith.mulf %26, %27 : vector<8x8xf32>
    %c0_27 = arith.constant 0 : index
    %c0_28 = arith.constant 0 : index
    %29 = vector.load %arg12[%c0_27, %c0_28] : memref<1x8xf32, #tpu.memory_space<vmem>>, vector<1x8xf32>
    "tpu.trace_start"() <{level = 10 : i32, message = "of,bf->ob"}> : () -> ()
    %cst_29 = arith.constant dense<0.000000e+00> : vector<1x8xf32>
    %30 = tpu.matmul %29, %28, %cst_29 {dimension_numbers = #tpu.dot_dimension_numbers<[1], [1], [0], [0], [0, 0, 1, 0], [], []>} : vector<1x8xf32>, vector<8x8xf32>, vector<1x8xf32> -> vector<1x8xf32>
    "tpu.trace_stop"() : () -> ()
    %c0_30 = arith.constant 0 : index
    %c0_31 = arith.constant 0 : index
    %31 = vector.load %arg13[%c0_30, %c0_31] : memref<1x8xf32, #tpu.memory_space<vmem>>, vector<1x8xf32>
    "tpu.trace_start"() <{level = 10 : i32, message = "of,bf->ob"}> : () -> ()
    %cst_32 = arith.constant dense<0.000000e+00> : vector<1x8xf32>
    %32 = tpu.matmul %31, %25, %cst_32 {dimension_numbers = #tpu.dot_dimension_numbers<[1], [1], [0], [0], [0, 0, 1, 0], [], []>} : vector<1x8xf32>, vector<8x8xf32>, vector<1x8xf32> -> vector<1x8xf32>
    "tpu.trace_stop"() : () -> ()
    %33 = arith.addf %30, %32 : vector<1x8xf32>
    %c0_33 = arith.constant 0 : index
    %c0_34 = arith.constant 0 : index
    %34 = memref.load %arg14[%c0_33, %c0_34] : memref<1x1xf32, #tpu.memory_space<smem>>
    %35 = vector.broadcast %34 : f32 to vector<1x8xf32>
    %36 = arith.addf %33, %35 : vector<1x8xf32>
    %c0_35 = arith.constant 0 : index
    %c0_36 = arith.constant 0 : index
    %37 = vector.load %arg15[%c0_35, %c0_36] : memref<1x8xf32, #tpu.memory_space<vmem>>, vector<1x8xf32>
    tpu.vector_store %arg15[%c0_35, %c0_36], %36 {strides = array<i32>} : memref<1x8xf32, #tpu.memory_space<vmem>>, vector<1x8xf32>,
    return
  }
  func.func @transform_0(%arg0: i32) -> (i32, i32) {
    %c0_i32 = arith.constant 0 : i32
    %c0_i32_0 = arith.constant 0 : i32
    return %arg0, %c0_i32 : i32, i32
  }
  func.func @transform_1(%arg0: i32) -> (i32, i32) {
    %c0_i32 = arith.constant 0 : i32
    %c0_i32_0 = arith.constant 0 : i32
    return %arg0, %c0_i32 : i32, i32
  }
  func.func @transform_2(%arg0: i32) -> (i32, i32) {
    %c0_i32 = arith.constant 0 : i32
    %c0_i32_0 = arith.constant 0 : i32
    return %arg0, %c0_i32 : i32, i32
  }
  func.func @transform_3(%arg0: i32) -> (i32, i32) {
    %c0_i32 = arith.constant 0 : i32
    %c0_i32_0 = arith.constant 0 : i32
    return %arg0, %c0_i32 : i32, i32
  }
  func.func @transform_4(%arg0: i32) -> (i32, i32) {
    %c0_i32 = arith.constant 0 : i32
    %c0_i32_0 = arith.constant 0 : i32
    %c0_i32_1 = arith.constant 0 : i32
    return %c0_i32, %c0_i32_0 : i32, i32
  }
  func.func @transform_5(%arg0: i32) -> (i32, i32) {
    %c0_i32 = arith.constant 0 : i32
    %c0_i32_0 = arith.constant 0 : i32
    %c0_i32_1 = arith.constant 0 : i32
    return %c0_i32, %c0_i32_0 : i32, i32
  }
  func.func @transform_6(%arg0: i32) -> (i32, i32) {
    %c0_i32 = arith.constant 0 : i32
    %c0_i32_0 = arith.constant 0 : i32
    %c0_i32_1 = arith.constant 0 : i32
    return %c0_i32, %c0_i32_0 : i32, i32
  }
  func.func @transform_7(%arg0: i32) -> (i32, i32) {
    %c0_i32 = arith.constant 0 : i32
    %c0_i32_0 = arith.constant 0 : i32
    %c0_i32_1 = arith.constant 0 : i32
    return %c0_i32, %c0_i32_0 : i32, i32
  }
  func.func @transform_8(%arg0: i32) -> (i32, i32) {
    %c0_i32 = arith.constant 0 : i32
    %c0_i32_0 = arith.constant 0 : i32
    %c0_i32_1 = arith.constant 0 : i32
    return %c0_i32, %c0_i32_0 : i32, i32
  }
  func.func @transform_9(%arg0: i32) -> (i32, i32) {
    %c0_i32 = arith.constant 0 : i32
    %c0_i32_0 = arith.constant 0 : i32
    %c0_i32_1 = arith.constant 0 : i32
    return %c0_i32, %c0_i32_0 : i32, i32
  }
  func.func @transform_10(%arg0: i32) -> (i32, i32) {
    %c0_i32 = arith.constant 0 : i32
    %c0_i32_0 = arith.constant 0 : i32
    %c0_i32_1 = arith.constant 0 : i32
    return %c0_i32, %c0_i32_0 : i32, i32
  }
  func.func @transform_11(%arg0: i32) -> (i32, i32) {
    %c0_i32 = arith.constant 0 : i32
    %c0_i32_0 = arith.constant 0 : i32
    %c0_i32_1 = arith.constant 0 : i32
    return %c0_i32, %c0_i32_0 : i32, i32
  }
  func.func @transform_12(%arg0: i32) -> (i32, i32) {
    %c0_i32 = arith.constant 0 : i32
    %c0_i32_0 = arith.constant 0 : i32
    %c0_i32_1 = arith.constant 0 : i32
    return %c0_i32, %c0_i32_0 : i32, i32
  }
  func.func @transform_13(%arg0: i32) -> (i32, i32) {
    %c0_i32 = arith.constant 0 : i32
    %c0_i32_0 = arith.constant 0 : i32
    %c0_i32_1 = arith.constant 0 : i32
    return %c0_i32, %c0_i32_0 : i32, i32
  }
  func.func @transform_14(%arg0: i32) -> (i32, i32) {
    %c0_i32 = arith.constant 0 : i32
    %c0_i32_0 = arith.constant 0 : i32
    return %c0_i32, %arg0 : i32, i32
  }
}

</mosaic_0001>

<llo_original>
// kernel: ncf_forward_pallas.1
$region0: #{ncf_forward_pallas.1}
  #allocation0 [shape = 'u32[]', space=smem, size = 0x4, offset = 0x4, fixed_abs, tag = 'smem constant byte address 0x4 - core index']
  #allocation1 [shape = 'u32[144,128]{1,0:T(1,128)}', space=vmem, size = 0x12000, scoped, tag = 'internal scratch']
  #allocation2 [shape = 'f32[1,1]{1,0:T(1,128)S(6)}', space=smem, size = 0x200, scoped, tag = 'scoped memory for ncf_forward_pallas.1']
  %s0 = inlined_call_operand.vmem [shape: f32[8,32], index: 0, kind: input, shape index: {}]
  %s1 = inlined_call_operand.vmem [shape: f32[8,32], index: 1, kind: input, shape index: {}]
  %s2 = inlined_call_operand.vmem [shape: f32[8,8], index: 2, kind: input, shape index: {}]
  %s3 = inlined_call_operand.vmem [shape: f32[8,8], index: 3, kind: input, shape index: {}]
  %s4 = inlined_call_operand.vmem [shape: f32[32,32], index: 4, kind: input, shape index: {}]
  %s5 = inlined_call_operand.vmem [shape: f32[32,32], index: 5, kind: input, shape index: {}]
  %s6 = inlined_call_operand.vmem [shape: f32[1,32], index: 6, kind: input, shape index: {}]
  %s7 = inlined_call_operand.vmem [shape: f32[32,16], index: 7, kind: input, shape index: {}]
  %s8 = inlined_call_operand.vmem [shape: f32[1,16], index: 8, kind: input, shape index: {}]
  %s9 = inlined_call_operand.vmem [shape: f32[16,8], index: 9, kind: input, shape index: {}]
  %s10 = inlined_call_operand.vmem [shape: f32[1,8], index: 10, kind: input, shape index: {}]
  %s11 = inlined_call_operand.vmem [shape: f32[1,8], index: 11, kind: input, shape index: {}]
  %s12 = inlined_call_operand.vmem [shape: f32[1,8], index: 12, kind: input, shape index: {}]
  %s13 = inlined_call_operand.<no memory space> [shape: f32[1,1], index: 13, kind: input, shape index: {}]
  %s14 = inlined_call_operand.hbm [shape: f32[1,8], index: 14, kind: output, shape index: {}]
  %s15 = sld [smem:[#allocation0]]
  $region66: #{ncf_forward_pallas.1} parent=0
    _
  %s17 = ssub.s32 1, %s15
  %s18 = scalar_select 0, %s17, %s15
  %19 = sst [smem:[#allocation2]] %s13
  $region1: #{ncf_forward_pallas.1} parent=0
    #allocation3 [shape = 'u8[512]{0}', space=vmem, size = 0x400, scoped, tag = 'output window, operand 0, single buffered']
    #allocation4 [shape = 's32[1]{0}', space=sflag, size = 0x4, scoped, tag = 'scoped memory for ncf_forward_pallas.1']
    %20 = vsyncpa [#allocation4], 0
    // Predicated region
    $region2: #{ncf_forward_pallas.1} parent=1 // pred_check
      _
    $region3: #{ncf_forward_pallas.1} parent=1 // pred_check_branch
      %22 = sbr.rel (0) target = $region5
    $region4: #{ncf_forward_pallas.1} parent=1 // pred_region
      _
    $region5: #{ncf_forward_pallas.1} parent=1 // pred_fallthru
      _
    // Predicated region
    $region6: #{ncf_forward_pallas.1} parent=1 // pred_check
      _
    $region7: #{ncf_forward_pallas.1} parent=1 // pred_check_branch
      %24 = sbr.rel (0) target = $region9
    $region8: #{ncf_forward_pallas.1} parent=1 // pred_region
      _
    $region9: #{ncf_forward_pallas.1} parent=1 // pred_fallthru
      _
    // Predicated region
    $region10: #{ncf_forward_pallas.1} parent=1 // pred_check
      _
    $region11: #{ncf_forward_pallas.1} parent=1 // pred_check_branch
      %26 = sbr.rel (0) target = $region13
    $region12: #{ncf_forward_pallas.1} parent=1 // pred_region
      _
    $region13: #{ncf_forward_pallas.1} parent=1 // pred_fallthru
      _
    // Predicated region
    $region14: #{ncf_forward_pallas.1} parent=1 // pred_check
      _
    $region15: #{ncf_forward_pallas.1} parent=1 // pred_check_branch
      %28 = sbr.rel (0) target = $region17
    $region16: #{ncf_forward_pallas.1} parent=1 // pred_region
      _
    $region17: #{ncf_forward_pallas.1} parent=1 // pred_fallthru
      _
    // Predicated region
    $region18: #{ncf_forward_pallas.1} parent=1 // pred_check
      _
    $region19: #{ncf_forward_pallas.1} parent=1 // pred_check_branch
      %30 = sbr.rel (0) target = $region21
    $region20: #{ncf_forward_pallas.1} parent=1 // pred_region
      _
    $region21: #{ncf_forward_pallas.1} parent=1 // pred_fallthru
      _
    // Predicated region
    $region22: #{ncf_forward_pallas.1} parent=1 // pred_check
      _
    $region23: #{ncf_forward_pallas.1} parent=1 // pred_check_branch
      %32 = sbr.rel (0) target = $region25
    $region24: #{ncf_forward_pallas.1} parent=1 // pred_region
      _
    $region25: #{ncf_forward_pallas.1} parent=1 // pred_fallthru
      _
    // Predicated region
    $region26: #{ncf_forward_pallas.1} parent=1 // pred_check
      _
    $region27: #{ncf_forward_pallas.1} parent=1 // pred_check_branch
      %34 = sbr.rel (0) target = $region29
    $region28: #{ncf_forward_pallas.1} parent=1 // pred_region
      _
    $region29: #{ncf_forward_pallas.1} parent=1 // pred_fallthru
      _
    // Predicated region
    $region30: #{ncf_forward_pallas.1} parent=1 // pred_check
      _
    $region31: #{ncf_forward_pallas.1} parent=1 // pred_check_branch
      %36 = sbr.rel (0) target = $region33
    $region32: #{ncf_forward_pallas.1} parent=1 // pred_region
      _
    $region33: #{ncf_forward_pallas.1} parent=1 // pred_fallthru
      _
    // Predicated region
    $region34: #{ncf_forward_pallas.1} parent=1 // pred_check
      _
    $region35: #{ncf_forward_pallas.1} parent=1 // pred_check_branch
      %38 = sbr.rel (0) target = $region37
    $region36: #{ncf_forward_pallas.1} parent=1 // pred_region
      _
    $region37: #{ncf_forward_pallas.1} parent=1 // pred_fallthru
      _
    // Predicated region
    $region38: #{ncf_forward_pallas.1} parent=1 // pred_check
      _
    $region39: #{ncf_forward_pallas.1} parent=1 // pred_check_branch
      %40 = sbr.rel (0) target = $region41
    $region40: #{ncf_forward_pallas.1} parent=1 // pred_region
      _
    $region41: #{ncf_forward_pallas.1} parent=1 // pred_fallthru
      _
    // Predicated region
    $region42: #{ncf_forward_pallas.1} parent=1 // pred_check
      _
    $region43: #{ncf_forward_pallas.1} parent=1 // pred_check_branch
      %42 = sbr.rel (0) target = $region45
    $region44: #{ncf_forward_pallas.1} parent=1 // pred_region
      _
    $region45: #{ncf_forward_pallas.1} parent=1 // pred_fallthru
      _
    // Predicated region
    $region46: #{ncf_forward_pallas.1} parent=1 // pred_check
      _
    $region47: #{ncf_forward_pallas.1} parent=1 // pred_check_branch
      %44 = sbr.rel (0) target = $region49
    $region48: #{ncf_forward_pallas.1} parent=1 // pred_region
      _
    $region49: #{ncf_forward_pallas.1} parent=1 // pred_fallthru
      _
    // Predicated region
    $region50: #{ncf_forward_pallas.1} parent=1 // pred_check
      _
    $region51: #{ncf_forward_pallas.1} parent=1 // pred_check_branch
      %46 = sbr.rel (0) target = $region53
    $region52: #{ncf_forward_pallas.1} parent=1 // pred_region
      _
    $region53: #{ncf_forward_pallas.1} parent=1 // pred_fallthru
      _
    // Predicated region
    $region54: #{ncf_forward_pallas.1} parent=1 // pred_check
      _
    $region55: #{ncf_forward_pallas.1} parent=1 // pred_check_branch
      %48 = sbr.rel (0) target = $region57
    $region56: #{ncf_forward_pallas.1} parent=1 // pred_region
      _
    $region57: #{ncf_forward_pallas.1} parent=1 // pred_fallthru
      _
    %v49 = vld [vmem:[%s4] sm:$0xff]
    %v50 = vld [vmem:[%s4 + $0x8] sm:$0xff]
    %v51 = vld [vmem:[%s4 + $0x10] sm:$0xff]
    %v52 = vld [vmem:[%s4 + $0x18] sm:$0xff]
    %v53 = vld [vmem:[%s5] sm:$0xff]
    %v54 = vld [vmem:[%s5 + $0x8] sm:$0xff]
    %v55 = vld [vmem:[%s5 + $0x10] sm:$0xff]
    %v56 = vld [vmem:[%s5 + $0x18] sm:$0xff]
    %v57 = vld [vmem:[%s0] sm:$0xff]
    %v58 = vld [vmem:[%s1] sm:$0xff]
    %vm59 = vcmask 261120
    %v61 = vsel %vm59, %v58, 0
    %63 = vmatprep.subr.mxu0 0.0
    %64 = vmatpush1.msra.mxu0 %v53
    %65 = vmatprep.subr.mxu0 0.0
    %66 = vmatpush1.msra.mxu0 %v54
    %67 = vmatprep.subr.mxu0 0.0
    %68 = vmatpush1.msra.mxu0 %v55
    %69 = vmatprep.subr.mxu0 0.0
    %70 = vmatpush1.msra.mxu0 %v56
    %71 = vmatprep.subr.mxu0 0.0
    %72 = vmatpush1.msra.mxu0 0.0
    %73 = vmatprep.subr.mxu0 0.0
    %74 = vmatpush1.msra.mxu0 0.0
    %75 = vmatprep.subr.mxu0 0.0
    %76 = vmatpush1.msra.mxu0 0.0
    %77 = vmatprep.subr.mxu0 0.0
    %78 = vmatpush1.msra.mxu0 0.0
    %79 = vmatprep.subr.mxu0 0.0
    %80 = vmatpush1.msra.mxu0 0.0
    %81 = vmatprep.subr.mxu0 0.0
    %82 = vmatpush1.msra.mxu0 0.0
    %83 = vmatprep.subr.mxu0 0.0
    %84 = vmatpush1.msra.mxu0 0.0
    %85 = vmatprep.subr.mxu0 0.0
    %86 = vmatpush1.msra.mxu0 0.0
    %87 = vmatprep.subr.mxu0 0.0
    %88 = vmatpush1.msra.mxu0 0.0
    %89 = vmatprep.subr.mxu0 0.0
    %90 = vmatpush1.msra.mxu0 0.0
    %91 = vmatprep.subr.mxu0 0.0
    %92 = vmatpush1.msra.mxu0 0.0
    %93 = vmatprep.subr.mxu0 0.0
    %94 = vmatpush1.msra.mxu0 0.0
    %95 = vmatprep.subr.mxu0 0.0
    %96 = vmatpush1.msra.mxu0 0.0
    %97 = vmatprep.subr.mxu0 0.0
    %98 = vmatpush1.msra.mxu0 0.0
    %99 = vmatprep.subr.mxu0 0.0
    %100 = vmatpush1.msra.mxu0 0.0
    %101 = vmatprep.subr.mxu0 0.0
    %102 = vmatpush1.msra.mxu0 0.0
    %103 = vmatprep.subr.mxu0 0.0
    %104 = vmatpush1.msra.mxu0 0.0
    %105 = vmatprep.subr.mxu0 0.0
    %106 = vmatpush1.msra.mxu0 0.0
    %107 = vmatprep.subr.mxu0 0.0
    %108 = vmatpush1.msra.mxu0 0.0
    %109 = vmatprep.subr.mxu0 0.0
    %110 = vmatpush1.msra.mxu0 0.0
    %111 = vmatprep.subr.mxu0 0.0
    %112 = vmatpush1.msra.mxu0 0.0
    %113 = vmatprep.subr.mxu0 0.0
    %114 = vmatpush1.msra.mxu0 0.0
    %115 = vmatprep.subr.mxu0 0.0
    %116 = vmatpush1.msra.mxu0 0.0
    %117 = vmatprep.subr.mxu0 0.0
    %118 = vmatpush1.msra.mxu0 0.0
    %119 = vmatprep.subr.mxu0 0.0
    %120 = vmatpush1.msra.mxu0 0.0
    %121 = vmatprep.subr.mxu0 0.0
    %122 = vmatpush1.msra.mxu0 0.0
    %123 = vmatprep.subr.mxu0 0.0
    %124 = vmatpush1.msra.mxu0 0.0
    %125 = vmatprep.subr.mxu0 0.0
    %126 = vmatpush1.msra.mxu0 0.0
    %127 = vmatprep.mubr.f32.mxu0 0.0
    %128 = vmatmul.mubr.f32.gmra.mrb[0].mxu0 %v61
    %v129 = vpop.f32.mrb[0].mxu0
    %v130 = vadd.f32 0.0, %v129
    %v131 = vpop.f32.mrb[0].mxu0
    %132 = vdwg.mxu0
    %v134 = vsel %vm59, %v57, 0
    %136 = vmatprep.subr.mxu0 0.0
    %137 = vmatpush1.msra.mxu0 %v49
    %138 = vmatprep.subr.mxu0 0.0
    %139 = vmatpush1.msra.mxu0 %v50
    %140 = vmatprep.subr.mxu0 0.0
    %141 = vmatpush1.msra.mxu0 %v51
    %142 = vmatprep.subr.mxu0 0.0
    %143 = vmatpush1.msra.mxu0 %v52
    %144 = vmatprep.subr.mxu0 0.0
    %145 = vmatpush1.msra.mxu0 0.0
    %146 = vmatprep.subr.mxu0 0.0
    %147 = vmatpush1.msra.mxu0 0.0
    %148 = vmatprep.subr.mxu0 0.0
    %149 = vmatpush1.msra.mxu0 0.0
    %150 = vmatprep.subr.mxu0 0.0
    %151 = vmatpush1.msra.mxu0 0.0
    %152 = vmatprep.subr.mxu0 0.0
    %153 = vmatpush1.msra.mxu0 0.0
    %154 = vmatprep.subr.mxu0 0.0
    %155 = vmatpush1.msra.mxu0 0.0
    %156 = vmatprep.subr.mxu0 0.0
    %157 = vmatpush1.msra.mxu0 0.0
    %158 = vmatprep.subr.mxu0 0.0
    %159 = vmatpush1.msra.mxu0 0.0
    %160 = vmatprep.subr.mxu0 0.0
    %161 = vmatpush1.msra.mxu0 0.0
    %162 = vmatprep.subr.mxu0 0.0
    %163 = vmatpush1.msra.mxu0 0.0
    %164 = vmatprep.subr.mxu0 0.0
    %165 = vmatpush1.msra.mxu0 0.0
    %166 = vmatprep.subr.mxu0 0.0
    %167 = vmatpush1.msra.mxu0 0.0
    %168 = vmatprep.subr.mxu0 0.0
    %169 = vmatpush1.msra.mxu0 0.0
    %170 = vmatprep.subr.mxu0 0.0
    %171 = vmatpush1.msra.mxu0 0.0
    %172 = vmatprep.subr.mxu0 0.0
    %173 = vmatpush1.msra.mxu0 0.0
    %174 = vmatprep.subr.mxu0 0.0
    %175 = vmatpush1.msra.mxu0 0.0
    %176 = vmatprep.subr.mxu0 0.0
    %177 = vmatpush1.msra.mxu0 0.0
    %178 = vmatprep.subr.mxu0 0.0
    %179 = vmatpush1.msra.mxu0 0.0
    %180 = vmatprep.subr.mxu0 0.0
    %181 = vmatpush1.msra.mxu0 0.0
    %182 = vmatprep.subr.mxu0 0.0
    %183 = vmatpush1.msra.mxu0 0.0
    %184 = vmatprep.subr.mxu0 0.0
    %185 = vmatpush1.msra.mxu0 0.0
    %186 = vmatprep.subr.mxu0 0.0
    %187 = vmatpush1.msra.mxu0 0.0
    %188 = vmatprep.subr.mxu0 0.0
    %189 = vmatpush1.msra.mxu0 0.0
    %190 = vmatprep.subr.mxu0 0.0
    %191 = vmatpush1.msra.mxu0 0.0
    %192 = vmatprep.subr.mxu0 0.0
    %193 = vmatpush1.msra.mxu0 0.0
    %194 = vmatprep.subr.mxu0 0.0
    %195 = vmatpush1.msra.mxu0 0.0
    %196 = vmatprep.subr.mxu0 0.0
    %197 = vmatpush1.msra.mxu0 0.0
    %198 = vmatprep.subr.mxu0 0.0
    %199 = vmatpush1.msra.mxu0 0.0
    %200 = vmatprep.mubr.f32.mxu0 0.0
    %201 = vmatmul.mubr.f32.gmra.mrb[0].mxu0 %v134
    %v202 = vpop.f32.mrb[0].mxu0
    %v203 = vadd.f32 %v130, %v202
    %v204 = vpop.f32.mrb[0].mxu0
    %205 = vdwg.mxu0
    %v206 = vld [vmem:[%s6] sm:$0x1]
    %v208 = vlaneseq
    %v209 = vshrl.u32 %v208, 7
    %v210 = vsub.s32 0, %v209
    %v211 = vrot.slane %v206, %v210
    %v213 = vadd.f32 %v203, %v211
    %v214 = vmax.f32 %v213, 0.0
    %v215 = vld [vmem:[%s7] sm:$0xff]
    %v216 = vld [vmem:[%s7 + $0x8] sm:$0xff]
    %v217 = vld [vmem:[%s7 + $0x10] sm:$0xff]
    %v218 = vld [vmem:[%s7 + $0x18] sm:$0xff]
    %v219 = vld [vmem:[%s8] sm:$0x1]
    %v221 = vlaneseq
    %v222 = vshrl.u32 %v221, 7
    %v223 = vsub.s32 0, %v222
    %v224 = vrot.slane %v219, %v223
    %v227 = vsel %vm59, %v214, 0
    %229 = vmatprep.subr.mxu0 0.0
    %230 = vmatpush1.msra.mxu0 %v215
    %231 = vmatprep.subr.mxu0 0.0
    %232 = vmatpush1.msra.mxu0 %v216
    %233 = vmatprep.subr.mxu0 0.0
    %234 = vmatpush1.msra.mxu0 %v217
    %235 = vmatprep.subr.mxu0 0.0
    %236 = vmatpush1.msra.mxu0 %v218
    %237 = vmatprep.subr.mxu0 0.0
    %238 = vmatpush1.msra.mxu0 0.0
    %239 = vmatprep.subr.mxu0 0.0
    %240 = vmatpush1.msra.mxu0 0.0
    %241 = vmatprep.subr.mxu0 0.0
    %242 = vmatpush1.msra.mxu0 0.0
    %243 = vmatprep.subr.mxu0 0.0
    %244 = vmatpush1.msra.mxu0 0.0
    %245 = vmatprep.subr.mxu0 0.0
    %246 = vmatpush1.msra.mxu0 0.0
    %247 = vmatprep.subr.mxu0 0.0
    %248 = vmatpush1.msra.mxu0 0.0
    %249 = vmatprep.subr.mxu0 0.0
    %250 = vmatpush1.msra.mxu0 0.0
    %251 = vmatprep.subr.mxu0 0.0
    %252 = vmatpush1.msra.mxu0 0.0
    %253 = vmatprep.subr.mxu0 0.0
    %254 = vmatpush1.msra.mxu0 0.0
    %255 = vmatprep.subr.mxu0 0.0
    %256 = vmatpush1.msra.mxu0 0.0
    %257 = vmatprep.subr.mxu0 0.0
    %258 = vmatpush1.msra.mxu0 0.0
    %259 = vmatprep.subr.mxu0 0.0
    %260 = vmatpush1.msra.mxu0 0.0
    %261 = vmatprep.subr.mxu0 0.0
    %262 = vmatpush1.msra.mxu0 0.0
    %263 = vmatprep.subr.mxu0 0.0
    %264 = vmatpush1.msra.mxu0 0.0
    %265 = vmatprep.subr.mxu0 0.0
    %266 = vmatpush1.msra.mxu0 0.0
    %267 = vmatprep.subr.mxu0 0.0
    %268 = vmatpush1.msra.mxu0 0.0
    %269 = vmatprep.subr.mxu0 0.0
    %270 = vmatpush1.msra.mxu0 0.0
    %271 = vmatprep.subr.mxu0 0.0
    %272 = vmatpush1.msra.mxu0 0.0
    %273 = vmatprep.subr.mxu0 0.0
    %274 = vmatpush1.msra.mxu0 0.0
    %275 = vmatprep.subr.mxu0 0.0
    %276 = vmatpush1.msra.mxu0 0.0
    %277 = vmatprep.subr.mxu0 0.0
    %278 = vmatpush1.msra.mxu0 0.0
    %279 = vmatprep.subr.mxu0 0.0
    %280 = vmatpush1.msra.mxu0 0.0
    %281 = vmatprep.subr.mxu0 0.0
    %282 = vmatpush1.msra.mxu0 0.0
    %283 = vmatprep.subr.mxu0 0.0
    %284 = vmatpush1.msra.mxu0 0.0
    %285 = vmatprep.subr.mxu0 0.0
    %286 = vmatpush1.msra.mxu0 0.0
    %287 = vmatprep.subr.mxu0 0.0
    %288 = vmatpush1.msra.mxu0 0.0
    %289 = vmatprep.subr.mxu0 0.0
    %290 = vmatpush1.msra.mxu0 0.0
    %291 = vmatprep.subr.mxu0 0.0
    %292 = vmatpush1.msra.mxu0 0.0
    %293 = vmatprep.mubr.f32.mxu0 0.0
    %294 = vmatmul.mubr.f32.gmra.mrb[0].mxu0 %v227
    %v295 = vpop.f32.mrb[0].mxu0
    %v296 = vadd.f32 %v224, %v295
    %v297 = vpop.f32.mrb[0].mxu0
    %298 = vdwg.mxu0
    %v299 = vmax.f32 %v296, 0.0
    %v300 = vld [vmem:[%s9] sm:$0xff]
    %v301 = vld [vmem:[%s9 + $0x8] sm:$0xff]
    %v302 = vld [vmem:[%s10] sm:$0x1]
    %v304 = vlaneseq
    %v305 = vshrl.u32 %v304, 7
    %v306 = vsub.s32 0, %v305
    %v307 = vrot.slane %v302, %v306
    %vm309 = vcmask 130048
    %v311 = vsel %vm309, %v299, 0
    %313 = vmatprep.subr.mxu0 0.0
    %314 = vmatpush1.msra.mxu0 %v300
    %315 = vmatprep.subr.mxu0 0.0
    %316 = vmatpush1.msra.mxu0 %v301
    %317 = vmatprep.subr.mxu0 0.0
    %318 = vmatpush1.msra.mxu0 0.0
    %319 = vmatprep.subr.mxu0 0.0
    %320 = vmatpush1.msra.mxu0 0.0
    %321 = vmatprep.subr.mxu0 0.0
    %322 = vmatpush1.msra.mxu0 0.0
    %323 = vmatprep.subr.mxu0 0.0
    %324 = vmatpush1.msra.mxu0 0.0
    %325 = vmatprep.subr.mxu0 0.0
    %326 = vmatpush1.msra.mxu0 0.0
    %327 = vmatprep.subr.mxu0 0.0
    %328 = vmatpush1.msra.mxu0 0.0
    %329 = vmatprep.subr.mxu0 0.0
    %330 = vmatpush1.msra.mxu0 0.0
    %331 = vmatprep.subr.mxu0 0.0
    %332 = vmatpush1.msra.mxu0 0.0
    %333 = vmatprep.subr.mxu0 0.0
    %334 = vmatpush1.msra.mxu0 0.0
    %335 = vmatprep.subr.mxu0 0.0
    %336 = vmatpush1.msra.mxu0 0.0
    %337 = vmatprep.subr.mxu0 0.0
    %338 = vmatpush1.msra.mxu0 0.0
    %339 = vmatprep.subr.mxu0 0.0
    %340 = vmatpush1.msra.mxu0 0.0
    %341 = vmatprep.subr.mxu0 0.0
    %342 = vmatpush1.msra.mxu0 0.0
    %343 = vmatprep.subr.mxu0 0.0
    %344 = vmatpush1.msra.mxu0 0.0
    %345 = vmatprep.subr.mxu0 0.0
    %346 = vmatpush1.msra.mxu0 0.0
    %347 = vmatprep.subr.mxu0 0.0
    %348 = vmatpush1.msra.mxu0 0.0
    %349 = vmatprep.subr.mxu0 0.0
    %350 = vmatpush1.msra.mxu0 0.0
    %351 = vmatprep.subr.mxu0 0.0
    %352 = vmatpush1.msra.mxu0 0.0
    %353 = vmatprep.subr.mxu0 0.0
    %354 = vmatpush1.msra.mxu0 0.0
    %355 = vmatprep.subr.mxu0 0.0
    %356 = vmatpush1.msra.mxu0 0.0
    %357 = vmatprep.subr.mxu0 0.0
    %358 = vmatpush1.msra.mxu0 0.0
    %359 = vmatprep.subr.mxu0 0.0
    %360 = vmatpush1.msra.mxu0 0.0
    %361 = vmatprep.subr.mxu0 0.0
    %362 = vmatpush1.msra.mxu0 0.0
    %363 = vmatprep.subr.mxu0 0.0
    %364 = vmatpush1.msra.mxu0 0.0
    %365 = vmatprep.subr.mxu0 0.0
    %366 = vmatpush1.msra.mxu0 0.0
    %367 = vmatprep.subr.mxu0 0.0
    %368 = vmatpush1.msra.mxu0 0.0
    %369 = vmatprep.subr.mxu0 0.0
    %370 = vmatpush1.msra.mxu0 0.0
    %371 = vmatprep.subr.mxu0 0.0
    %372 = vmatpush1.msra.mxu0 0.0
    %373 = vmatprep.subr.mxu0 0.0
    %374 = vmatpush1.msra.mxu0 0.0
    %375 = vmatprep.subr.mxu0 0.0
    %376 = vmatpush1.msra.mxu0 0.0
    %377 = vmatprep.mubr.f32.mxu0 0.0
    %378 = vmatmul.mubr.f32.gmra.mrb[0].mxu0 %v311
    %v379 = vpop.f32.mrb[0].mxu0
    %v380 = vadd.f32 %v307, %v379
    %v381 = vpop.f32.mrb[0].mxu0
    %382 = vdwg.mxu0
    %v383 = vmax.f32 %v380, 0.0
    %v384 = vld [vmem:[%s2] sm:$0xff]
    %v385 = vld [vmem:[%s3] sm:$0xff]
    %v386 = vmul.f32 %v384, %v385
    %v387 = vld [vmem:[%s11] sm:$0x1]
    %v388 = vld [vmem:[%s12] sm:$0x1]
    %vm389 = vcmask 64512
    %v391 = vsel %vm389, %v388, 0
    %v394 = vsel %vm389, %v383, 0
    %396 = vmatprep.subr.mxu0 0.0
    %397 = vmatpush1.xpose.msra.mxu0 %v394
    %398 = vmatprep.subr.mxu0 0.0
    %399 = vmatpush1.xpose.msra.mxu0 0.0
    %400 = vmatprep.subr.mxu0 0.0
    %401 = vmatpush1.xpose.msra.mxu0 0.0
    %402 = vmatprep.subr.mxu0 0.0
    %403 = vmatpush1.xpose.msra.mxu0 0.0
    %404 = vmatprep.subr.mxu0 0.0
    %405 = vmatpush1.xpose.msra.mxu0 0.0
    %406 = vmatprep.subr.mxu0 0.0
    %407 = vmatpush1.xpose.msra.mxu0 0.0
    %408 = vmatprep.subr.mxu0 0.0
    %409 = vmatpush1.xpose.msra.mxu0 0.0
    %410 = vmatprep.subr.mxu0 0.0
    %411 = vmatpush1.xpose.msra.mxu0 0.0
    %412 = vmatprep.subr.mxu0 0.0
    %413 = vmatpush1.xpose.msra.mxu0 0.0
    %414 = vmatprep.subr.mxu0 0.0
    %415 = vmatpush1.xpose.msra.mxu0 0.0
    %416 = vmatprep.subr.mxu0 0.0
    %417 = vmatpush1.xpose.msra.mxu0 0.0
    %418 = vmatprep.subr.mxu0 0.0
    %419 = vmatpush1.xpose.msra.mxu0 0.0
    %420 = vmatprep.subr.mxu0 0.0
    %421 = vmatpush1.xpose.msra.mxu0 0.0
    %422 = vmatprep.subr.mxu0 0.0
    %423 = vmatpush1.xpose.msra.mxu0 0.0
    %424 = vmatprep.subr.mxu0 0.0
    %425 = vmatpush1.xpose.msra.mxu0 0.0
    %426 = vmatprep.subr.mxu0 0.0
    %427 = vmatpush1.xpose.msra.mxu0 0.0
    %428 = vmatprep.subr.mxu0 0.0
    %429 = vmatpush1.xpose.msra.mxu0 0.0
    %430 = vmatprep.subr.mxu0 0.0
    %431 = vmatpush1.xpose.msra.mxu0 0.0
    %432 = vmatprep.subr.mxu0 0.0
    %433 = vmatpush1.xpose.msra.mxu0 0.0
    %434 = vmatprep.subr.mxu0 0.0
    %435 = vmatpush1.xpose.msra.mxu0 0.0
    %436 = vmatprep.subr.mxu0 0.0
    %437 = vmatpush1.xpose.msra.mxu0 0.0
    %438 = vmatprep.subr.mxu0 0.0
    %439 = vmatpush1.xpose.msra.mxu0 0.0
    %440 = vmatprep.subr.mxu0 0.0
    %441 = vmatpush1.xpose.msra.mxu0 0.0
    %442 = vmatprep.subr.mxu0 0.0
    %443 = vmatpush1.xpose.msra.mxu0 0.0
    %444 = vmatprep.subr.mxu0 0.0
    %445 = vmatpush1.xpose.msra.mxu0 0.0
    %446 = vmatprep.subr.mxu0 0.0
    %447 = vmatpush1.xpose.msra.mxu0 0.0
    %448 = vmatprep.subr.mxu0 0.0
    %449 = vmatpush1.xpose.msra.mxu0 0.0
    %450 = vmatprep.subr.mxu0 0.0
    %451 = vmatpush1.xpose.msra.mxu0 0.0
    %452 = vmatprep.subr.mxu0 0.0
    %453 = vmatpush1.xpose.msra.mxu0 0.0
    %454 = vmatprep.subr.mxu0 0.0
    %455 = vmatpush1.xpose.msra.mxu0 0.0
    %456 = vmatprep.subr.mxu0 0.0
    %457 = vmatpush1.xpose.msra.mxu0 0.0
    %458 = vmatprep.subr.mxu0 0.0
    %459 = vmatpush1.xpose.msra.mxu0 0.0
    %460 = vmatprep.mubr.f32.mxu0 0.0
    %461 = vmatmul.mubr.f32.gmra.mrb[0].mxu0 %v391
    %v462 = vpop.f32.mrb[0].mxu0
    %v463 = vadd.f32 0.0, %v462
    %v464 = vpop.f32.mrb[0].mxu0
    %465 = vdwg.mxu0
    %v467 = vsel %vm389, %v387, 0
    %v470 = vsel %vm389, %v386, 0
    %472 = vmatprep.subr.mxu0 0.0
    %473 = vmatpush1.xpose.msra.mxu0 %v470
    %474 = vmatprep.subr.mxu0 0.0
    %475 = vmatpush1.xpose.msra.mxu0 0.0
    %476 = vmatprep.subr.mxu0 0.0
    %477 = vmatpush1.xpose.msra.mxu0 0.0
    %478 = vmatprep.subr.mxu0 0.0
    %479 = vmatpush1.xpose.msra.mxu0 0.0
    %480 = vmatprep.subr.mxu0 0.0
    %481 = vmatpush1.xpose.msra.mxu0 0.0
    %482 = vmatprep.subr.mxu0 0.0
    %483 = vmatpush1.xpose.msra.mxu0 0.0
    %484 = vmatprep.subr.mxu0 0.0
    %485 = vmatpush1.xpose.msra.mxu0 0.0
    %486 = vmatprep.subr.mxu0 0.0
    %487 = vmatpush1.xpose.msra.mxu0 0.0
    %488 = vmatprep.subr.mxu0 0.0
    %489 = vmatpush1.xpose.msra.mxu0 0.0
    %490 = vmatprep.subr.mxu0 0.0
    %491 = vmatpush1.xpose.msra.mxu0 0.0
    %492 = vmatprep.subr.mxu0 0.0
    %493 = vmatpush1.xpose.msra.mxu0 0.0
    %494 = vmatprep.subr.mxu0 0.0
    %495 = vmatpush1.xpose.msra.mxu0 0.0
    %496 = vmatprep.subr.mxu0 0.0
    %497 = vmatpush1.xpose.msra.mxu0 0.0
    %498 = vmatprep.subr.mxu0 0.0
    %499 = vmatpush1.xpose.msra.mxu0 0.0
    %500 = vmatprep.subr.mxu0 0.0
    %501 = vmatpush1.xpose.msra.mxu0 0.0
    %502 = vmatprep.subr.mxu0 0.0
    %503 = vmatpush1.xpose.msra.mxu0 0.0
    %504 = vmatprep.subr.mxu0 0.0
    %505 = vmatpush1.xpose.msra.mxu0 0.0
    %506 = vmatprep.subr.mxu0 0.0
    %507 = vmatpush1.xpose.msra.mxu0 0.0
    %508 = vmatprep.subr.mxu0 0.0
    %509 = vmatpush1.xpose.msra.mxu0 0.0
    %510 = vmatprep.subr.mxu0 0.0
    %511 = vmatpush1.xpose.msra.mxu0 0.0
    %512 = vmatprep.subr.mxu0 0.0
    %513 = vmatpush1.xpose.msra.mxu0 0.0
    %514 = vmatprep.subr.mxu0 0.0
    %515 = vmatpush1.xpose.msra.mxu0 0.0
    %516 = vmatprep.subr.mxu0 0.0
    %517 = vmatpush1.xpose.msra.mxu0 0.0
    %518 = vmatprep.subr.mxu0 0.0
    %519 = vmatpush1.xpose.msra.mxu0 0.0
    %520 = vmatprep.subr.mxu0 0.0
    %521 = vmatpush1.xpose.msra.mxu0 0.0
    %522 = vmatprep.subr.mxu0 0.0
    %523 = vmatpush1.xpose.msra.mxu0 0.0
    %524 = vmatprep.subr.mxu0 0.0
    %525 = vmatpush1.xpose.msra.mxu0 0.0
    %526 = vmatprep.subr.mxu0 0.0
    %527 = vmatpush1.xpose.msra.mxu0 0.0
    %528 = vmatprep.subr.mxu0 0.0
    %529 = vmatpush1.xpose.msra.mxu0 0.0
    %530 = vmatprep.subr.mxu0 0.0
    %531 = vmatpush1.xpose.msra.mxu0 0.0
    %532 = vmatprep.subr.mxu0 0.0
    %533 = vmatpush1.xpose.msra.mxu0 0.0
    %534 = vmatprep.subr.mxu0 0.0
    %535 = vmatpush1.xpose.msra.mxu0 0.0
    %536 = vmatprep.mubr.f32.mxu0 0.0
    %537 = vmatmul.mubr.f32.gmra.mrb[0].mxu0 %v467
    %v538 = vpop.f32.mrb[0].mxu0
    %v539 = vadd.f32 %v463, %v538
    %v540 = vpop.f32.mrb[0].mxu0
    %541 = vdwg.mxu0
    %s542 = sld [smem:[#allocation2]]
    %v543 = vstv %s542
    %v544 = vadd.f32 %v539, %v543
    %vm545 = vcmask 57344
    %546 = vst.msk [vmem:[#allocation3] sm:$0x1] %vm545, %v544
    // Predicated region
    $region58: #{ncf_forward_pallas.1} parent=1 // pred_check
      _
    $region59: #{ncf_forward_pallas.1} parent=1 // pred_check_branch
      %548 = sbr.rel (0) target = $region61
    $region60: #{ncf_forward_pallas.1} parent=1 // pred_region
      %s550 = ssub.s32 16, 16
      %551 = vsyncadd [#allocation4], %s550
      %s553 = sshll.u32 [#allocation3], 4
      %s554 = int_to_ptr.vmem [resolvable:$true] %s553
      %556 = dma.vmem_to_hbm [thread:$0]  %s554, 16, %s14, [#allocation4]
    $region61: #{ncf_forward_pallas.1} parent=1 // pred_fallthru
      _
    // Predicated region
    $region62: #{ncf_forward_pallas.1} parent=1 // pred_check
      _
    $region63: #{ncf_forward_pallas.1} parent=1 // pred_check_branch
      %558 = sbr.rel (0) target = $region65
    $region64: #{ncf_forward_pallas.1} parent=1 // pred_region
      %559 = dma.done [#allocation4], 16
    $region65: #{ncf_forward_pallas.1} parent=1 // pred_fallthru
      _
    %560 = vsyncpa [#allocation4], 1

</llo_original>
